<compile_context>
chip_gen: v7x
topology: tpu7x:2x2x1
jax: 0.10.0
libtpu: 0.0.40
codegen_flags: <defaults>
</compile_context>

<pallas_src>
import functools

import jax
import jax.numpy as jnp
from jax.experimental import pallas as pl
from jax.experimental.pallas import tpu as pltpu


def _round_up(x, m):
    return (x + m - 1) // m * m


def base_quality_embed_kernel(idx_ref, table_ref, out_ref, *, max_quality):
    # idx_ref:   (TILE_ROWS, 1) int32   VMEM
    # table_ref: (V, D)         float32 VMEM (same block every step -> resident)
    # out_ref:   (TILE_ROWS, D)         VMEM
    rows = idx_ref.shape[0]
    V = table_ref.shape[0]

    idx = jnp.clip(idx_ref[...], 0, max_quality)                 # (TILE_ROWS, 1)
    vocab = jax.lax.broadcasted_iota(jnp.int32, (rows, V), 1)    # (TILE_ROWS, V)
    one_hot = (vocab == idx).astype(table_ref.dtype)             # (TILE_ROWS, V)
    emb = jnp.dot(one_hot, table_ref[...],
                  preferred_element_type=jnp.float32)            # (TILE_ROWS, D)
    out_ref[...] = emb.astype(out_ref.dtype)


def base_quality_embedding(indices, table, *, max_quality, tile_rows=1024,
                           out_dtype=None):
    """indices (B, S) int -> (B, S, D) = table[clamp(indices, 0, max_quality)]."""
    B, S = indices.shape
    V, D = table.shape
    out_dtype = out_dtype if out_dtype is not None else table.dtype

    n = B * S
    tr = min(tile_rows, _round_up(n, 8))      # row tile: multiple of 8 sublanes
    n_pad = _round_up(n, tr)

    idx_flat = indices.astype(jnp.int32).reshape(n, 1)
    if n_pad != n:
        idx_flat = jnp.pad(idx_flat, ((0, n_pad - n), (0, 0)))

    out = pl.pallas_call(
        functools.partial(base_quality_embed_kernel, max_quality=max_quality),
        out_shape=jax.ShapeDtypeStruct((n_pad, D), out_dtype),
        grid_spec=pltpu.PrefetchScalarGridSpec(
            num_scalar_prefetch=0,
            grid=(n_pad // tr,),
            in_specs=[
                pl.BlockSpec((tr, 1), lambda i: (i, 0)),   # row tile of indices
                pl.BlockSpec((V, D), lambda i: (0, 0)),    # whole table, resident
            ],
            out_specs=pl.BlockSpec((tr, D), lambda i: (i, 0)),
        ),
        compiler_params=pltpu.CompilerParams(
            dimension_semantics=("parallel",),   # rows independent -> megacore on v7x
            vmem_limit_bytes=32 * 1024 * 1024,
        ),
    )(idx_flat, table)

    return out[:n].reshape(B, S, D)


def init_base_quality_embedding_params(embedding_dim, key, max_quality=40):
    """Mirror nn.Embedding(max_quality + 2, D, padding_idx=-1): N(0,1), last row zero."""
    index_of_highest_quality = max_quality + 1
    num_embeddings = index_of_highest_quality + 1          # = max_quality + 2
    table = jax.random.normal(key, (num_embeddings, embedding_dim), dtype=jnp.float32)
    table = table.at[num_embeddings - 1].set(0.0)          # padding_idx=-1 -> last row
    return table


if __name__ == "__main__":
    key = jax.random.PRNGKey(0)
    k_table, k_idx = jax.random.split(key)

    embedding_dim = 128      # multiple of 128 -> lane-dense output stores
    max_quality = 40
    B, S = 2, 8

    table = init_base_quality_embedding_params(embedding_dim, k_table, max_quality)

    # Raw base qualities, including out-of-range values to exercise the clamp.
    indices = jax.random.randint(k_idx, (B, S), -1, max_quality + 20, dtype=jnp.int32)

    out = base_quality_embedding(indices, table, max_quality=max_quality)
    out = jax.block_until_ready(out)

    # Pure-JAX reference of the PyTorch forward: clamp then gather.
    ref = table[jnp.clip(indices, 0, max_quality)]
    assert out.shape == (B, S, embedding_dim)
    assert jnp.allclose(out, ref, atol=1e-6), "mismatch vs reference clamp+gather"

    print("KERNEL_OK")
</pallas_src>

<mosaic_0001>
module attributes {stable_mosaic.version = 11 : i64} {
  func.func @base_quality_embed_kernel(%arg0: i32, %arg1: memref<16x1xi32, #tpu.memory_space<vmem>>, %arg2: memref<42x128xf32, #tpu.memory_space<vmem>>, %arg3: memref<16x128xf32, #tpu.memory_space<vmem>>) attributes {dimension_semantics = [#tpu.dimension_semantics<parallel>], iteration_bounds = array<i64: 1>, scalar_prefetch = 0 : i64, scratch_operands = 0 : i64, tpu.core_type = #tpu.core_type<tc>, window_params = [{transform_indices = @transform_0, window_bounds = array<i64: 16, 1>}, {pipeline_mode = #tpu.pipeline_mode<synchronous>, transform_indices = @transform_1, window_bounds = array<i64: 42, 128>}, {transform_indices = @transform_2, window_bounds = array<i64: 16, 128>}]} {
    %c0 = arith.constant 0 : index
    %c0_0 = arith.constant 0 : index
    %0 = vector.load %arg1[%c0, %c0_0] : memref<16x1xi32, #tpu.memory_space<vmem>>, vector<16x1xi32>
    %c0_i32 = arith.constant 0 : i32
    %c40_i32 = arith.constant 40 : i32
    %1 = vector.broadcast %c0_i32 : i32 to vector<16x1xi32>
    %2 = arith.maxsi %1, %0 : vector<16x1xi32>
    %3 = vector.broadcast %c40_i32 : i32 to vector<16x1xi32>
    %4 = arith.minsi %3, %2 : vector<16x1xi32>
    %5 = tpu.iota {dimensions = array<i32: 1>} : vector<16x42xi32>
    %6 = vector.broadcast %4 : vector<16x1xi32> to vector<16x42xi32>
    %7 = arith.cmpi eq, %5, %6 : vector<16x42xi32>
    %8 = arith.extui %7 : vector<16x42xi1> to vector<16x42xi32>
    %9 = arith.sitofp %8 : vector<16x42xi32> to vector<16x42xf32>
    %c0_1 = arith.constant 0 : index
    %c0_2 = arith.constant 0 : index
    %10 = vector.load %arg2[%c0_1, %c0_2] : memref<42x128xf32, #tpu.memory_space<vmem>>, vector<42x128xf32>
    %cst = arith.constant dense<0.000000e+00> : vector<16x128xf32>
    %11 = tpu.matmul %9, %10, %cst {dimension_numbers = #tpu.dot_dimension_numbers<[1], [0], [0], [1], [0, 0, 1, 1], [], []>} : vector<16x42xf32>, vector<42x128xf32>, vector<16x128xf32> -> vector<16x128xf32>
    %c0_3 = arith.constant 0 : index
    %c0_4 = arith.constant 0 : index
    %12 = vector.load %arg3[%c0_3, %c0_4] : memref<16x128xf32, #tpu.memory_space<vmem>>, vector<16x128xf32>
    tpu.vector_store %arg3[%c0_3, %c0_4], %11 {strides = array<i32>} : memref<16x128xf32, #tpu.memory_space<vmem>>, vector<16x128xf32>,
    return
  }
  func.func @transform_0(%arg0: i32) -> (i32, i32) {
    %c0_i32 = arith.constant 0 : i32
    %c0_i32_0 = arith.constant 0 : i32
    return %arg0, %c0_i32 : i32, i32
  }
  func.func @transform_1(%arg0: i32) -> (i32, i32) {
    %c0_i32 = arith.constant 0 : i32
    %c0_i32_0 = arith.constant 0 : i32
    %c0_i32_1 = arith.constant 0 : i32
    return %c0_i32, %c0_i32_0 : i32, i32
  }
  func.func @transform_2(%arg0: i32) -> (i32, i32) {
    %c0_i32 = arith.constant 0 : i32
    %c0_i32_0 = arith.constant 0 : i32
    return %arg0, %c0_i32 : i32, i32
  }
}

</mosaic_0001>

<llo_original>
// kernel: tpu_custom_call.1
$region0: #{tpu_custom_call.1}
  #allocation0 [shape = 'u32[]', space=smem, size = 0x4, offset = 0x4, fixed_abs, tag = 'smem constant byte address 0x4 - core index']
  #allocation1 [shape = 'u32[144,128]{1,0:T(1,128)}', space=vmem, size = 0x12000, scoped, tag = 'internal scratch']
  %s0 = inlined_call_operand.vmem [shape: s32[16,1], index: 0, kind: input, shape index: {}]
  %s1 = inlined_call_operand.hbm [shape: f32[42,128], index: 1, kind: input, shape index: {}]
  %s2 = inlined_call_operand.hbm [shape: f32[16,128], index: 2, kind: output, shape index: {}]
  %s3 = sld [smem:[#allocation0]]
  $region22: #{tpu_custom_call.1} parent=0
    _
  %s5 = ssub.s32 1, %s3
  %s6 = scalar_select 0, %s5, %s3
  $region1: #{tpu_custom_call.1} parent=0
    #allocation2 [shape = 'u8[24576]{0}', space=vmem, size = 0x6000, scoped, tag = 'input window, operand 1, single buffered']
    #allocation3 [shape = 's32[1]{0}', space=sflag, size = 0x4, scoped, tag = 'scoped memory for tpu_custom_call.1']
    #allocation4 [shape = 's32[1]{0}', space=sflag, size = 0x4, scoped, tag = 'scoped memory for tpu_custom_call.1']
    #allocation5 [shape = 'u8[8192]{0}', space=vmem, size = 0x2000, scoped, tag = 'output window, operand 0, single buffered']
    %7 = vsyncpa [#allocation3], 0
    %8 = vsyncpa [#allocation4], 0
    // Predicated region
    $region2: #{tpu_custom_call.1} parent=1 // pred_check
      _
    $region3: #{tpu_custom_call.1} parent=1 // pred_check_branch
      %10 = sbr.rel (0) target = $region5
    $region4: #{tpu_custom_call.1} parent=1 // pred_region
      _
    $region5: #{tpu_custom_call.1} parent=1 // pred_fallthru
      _
    // Predicated region
    $region6: #{tpu_custom_call.1} parent=1 // pred_check
      _
    $region7: #{tpu_custom_call.1} parent=1 // pred_check_branch
      %12 = sbr.rel (0) target = $region9
    $region8: #{tpu_custom_call.1} parent=1 // pred_region
      %s14 = ssub.s32 768, 768
      %15 = vsyncadd [#allocation3], %s14
      %s16 = sshll.u32 [#allocation2], 4
      %s17 = int_to_ptr.vmem [resolvable:$true] %s16
      %22 = dma.hbm_to_vmem [thread:$0]  %s1, 768, %s17, [#allocation3], 128, 128, 8
    $region9: #{tpu_custom_call.1} parent=1 // pred_fallthru
      _
    // Predicated region
    $region10: #{tpu_custom_call.1} parent=1 // pred_check
      _
    $region11: #{tpu_custom_call.1} parent=1 // pred_check_branch
      %24 = sbr.rel (0) target = $region13
    $region12: #{tpu_custom_call.1} parent=1 // pred_region
      %25 = dma.done [#allocation3], 768
    $region13: #{tpu_custom_call.1} parent=1 // pred_fallthru
      _
    %v26 = vld [vmem:[%s0] sm:$0xff]
    %v27 = vld [vmem:[%s0 + $0x8] sm:$0xff]
    %vm28 = vcmp.gt.s32.totalorder %v26, 0
    %v29 = vsel %vm28, %v26, 0
    %vm30 = vcmp.gt.s32.totalorder %v27, 0
    %v31 = vsel %vm30, %v27, 0
    %vm32 = vcmp.lt.s32.totalorder %v29, 40
    %v33 = vsel %vm32, %v29, 40
    %vm34 = vcmp.lt.s32.totalorder %v31, 40
    %v35 = vsel %vm34, %v31, 40
    %v36 = vlaneseq
    %v37 = vand.u32 %v36, 127
    %38 = vset.pattern.permute.xlu0 0
    %39 = vperm.xlu0 %38, %v33
    %v40 = vpop.permute.xlu0 %39
    %41 = vset.pattern.permute.xlu0 0
    %42 = vperm.xlu0 %41, %v35
    %v43 = vpop.permute.xlu0 %42
    %vm44 = vcmp.eq.s32.totalorder %v37, %v40
    %vm45 = vcmp.eq.s32.totalorder %v37, %v43
    %v46 = vsel %vm44, 1, 0
    %v47 = vsel %vm45, 1, 0
    %v48 = vcvt.s32.f32 %v46
    %v49 = vcvt.s32.f32 %v47
    %v50 = vld [vmem:[#allocation2] sm:$0xff]
    %v51 = vld [vmem:[#allocation2 + $0x8] sm:$0xff]
    %v52 = vld [vmem:[#allocation2 + $0x10] sm:$0xff]
    %v53 = vld [vmem:[#allocation2 + $0x18] sm:$0xff]
    %v54 = vld [vmem:[#allocation2 + $0x20] sm:$0xff]
    %v55 = vld [vmem:[#allocation2 + $0x28] sm:$0x3]
    %vm56 = vcmask 343040
    %v58 = vsel %vm56, %v48, 0
    %v61 = vsel %vm56, %v49, 0
    %vm63 = vcmask 1041408
    %v65 = vsel %vm63, %v55, 0
    %67 = vmatprep.subr.mxu0 0.0
    %68 = vmatpush1.msra.mxu0 %v50
    %69 = vmatprep.subr.mxu0 0.0
    %70 = vmatpush1.msra.mxu0 %v51
    %71 = vmatprep.subr.mxu0 0.0
    %72 = vmatpush1.msra.mxu0 %v52
    %73 = vmatprep.subr.mxu0 0.0
    %74 = vmatpush1.msra.mxu0 %v53
    %75 = vmatprep.subr.mxu0 0.0
    %76 = vmatpush1.msra.mxu0 %v54
    %77 = vmatprep.subr.mxu0 0.0
    %78 = vmatpush1.msra.mxu0 %v65
    %79 = vmatprep.subr.mxu0 0.0
    %80 = vmatpush1.msra.mxu0 0.0
    %81 = vmatprep.subr.mxu0 0.0
    %82 = vmatpush1.msra.mxu0 0.0
    %83 = vmatprep.subr.mxu0 0.0
    %84 = vmatpush1.msra.mxu0 0.0
    %85 = vmatprep.subr.mxu0 0.0
    %86 = vmatpush1.msra.mxu0 0.0
    %87 = vmatprep.subr.mxu0 0.0
    %88 = vmatpush1.msra.mxu0 0.0
    %89 = vmatprep.subr.mxu0 0.0
    %90 = vmatpush1.msra.mxu0 0.0
    %91 = vmatprep.subr.mxu0 0.0
    %92 = vmatpush1.msra.mxu0 0.0
    %93 = vmatprep.subr.mxu0 0.0
    %94 = vmatpush1.msra.mxu0 0.0
    %95 = vmatprep.subr.mxu0 0.0
    %96 = vmatpush1.msra.mxu0 0.0
    %97 = vmatprep.subr.mxu0 0.0
    %98 = vmatpush1.msra.mxu0 0.0
    %99 = vmatprep.subr.mxu0 0.0
    %100 = vmatpush1.msra.mxu0 0.0
    %101 = vmatprep.subr.mxu0 0.0
    %102 = vmatpush1.msra.mxu0 0.0
    %103 = vmatprep.subr.mxu0 0.0
    %104 = vmatpush1.msra.mxu0 0.0
    %105 = vmatprep.subr.mxu0 0.0
    %106 = vmatpush1.msra.mxu0 0.0
    %107 = vmatprep.subr.mxu0 0.0
    %108 = vmatpush1.msra.mxu0 0.0
    %109 = vmatprep.subr.mxu0 0.0
    %110 = vmatpush1.msra.mxu0 0.0
    %111 = vmatprep.subr.mxu0 0.0
    %112 = vmatpush1.msra.mxu0 0.0
    %113 = vmatprep.subr.mxu0 0.0
    %114 = vmatpush1.msra.mxu0 0.0
    %115 = vmatprep.subr.mxu0 0.0
    %116 = vmatpush1.msra.mxu0 0.0
    %117 = vmatprep.subr.mxu0 0.0
    %118 = vmatpush1.msra.mxu0 0.0
    %119 = vmatprep.subr.mxu0 0.0
    %120 = vmatpush1.msra.mxu0 0.0
    %121 = vmatprep.subr.mxu0 0.0
    %122 = vmatpush1.msra.mxu0 0.0
    %123 = vmatprep.subr.mxu0 0.0
    %124 = vmatpush1.msra.mxu0 0.0
    %125 = vmatprep.subr.mxu0 0.0
    %126 = vmatpush1.msra.mxu0 0.0
    %127 = vmatprep.subr.mxu0 0.0
    %128 = vmatpush1.msra.mxu0 0.0
    %129 = vmatprep.subr.mxu0 0.0
    %130 = vmatpush1.msra.mxu0 0.0
    %131 = vmatprep.mubr.f32.mxu0 0.0
    %132 = vmatmul.mubr.f32.gmra.mrb[0].mxu0 %v58
    %v133 = vpop.f32.mrb[0].mxu0
    %v134 = vadd.f32 0.0, %v133
    %v135 = vpop.f32.mrb[0].mxu0
    %136 = vmatprep.mubr.f32.mxu0 0.0
    %137 = vmatmul.mubr.f32.gmra.mrb[0].mxu0 %v61
    %v138 = vpop.f32.mrb[0].mxu0
    %v139 = vadd.f32 0.0, %v138
    %v140 = vpop.f32.mrb[0].mxu0
    %141 = vdwg.mxu0
    %142 = vst [vmem:[#allocation5] sm:$0xff] %v134
    %143 = vst [vmem:[#allocation5 + $0x8] sm:$0xff] %v139
    // Predicated region
    $region14: #{tpu_custom_call.1} parent=1 // pred_check
      _
    $region15: #{tpu_custom_call.1} parent=1 // pred_check_branch
      %145 = sbr.rel (0) target = $region17
    $region16: #{tpu_custom_call.1} parent=1 // pred_region
      %s147 = ssub.s32 256, 256
      %148 = vsyncadd [#allocation4], %s147
      %s149 = sshll.u32 [#allocation5], 4
      %s150 = int_to_ptr.vmem [resolvable:$true] %s149
      %155 = dma.vmem_to_hbm [thread:$0]  %s150, 256, %s2, [#allocation4], 128, 128, 8
    $region17: #{tpu_custom_call.1} parent=1 // pred_fallthru
      _
    // Predicated region
    $region18: #{tpu_custom_call.1} parent=1 // pred_check
      _
    $region19: #{tpu_custom_call.1} parent=1 // pred_check_branch
      %157 = sbr.rel (0) target = $region21
    $region20: #{tpu_custom_call.1} parent=1 // pred_region
      %158 = dma.done [#allocation4], 256
    $region21: #{tpu_custom_call.1} parent=1 // pred_fallthru
      _
    %159 = vsyncpa [#allocation3], 1
    %160 = vsyncpa [#allocation4], 1

</llo_original>
